<compile_context>
chip_gen: v6e
topology: v6e:2x2x1
jax: 0.10.0
libtpu: 0.0.40
codegen_flags: <defaults>
</compile_context>

<pallas_src>
import math

import jax
import jax.numpy as jnp
from jax.experimental import pallas as pl
from jax.experimental.pallas import tpu as pltpu


_LANE = 128                                        # TPU lane width
_COL_CANDIDATES = (4096, 2048, 1024, 512, 256, 128)  # lane-dense slab widths
_MIN_PALLAS_ELEMS = 1024                           # below this, launch cost dominates
_MIN_GRID_STEPS = 8                                # enough steps for DMA/compute overlap


def _sublane(*dtypes):
    """Second-to-last block-dim alignment: 8 for 4-byte, 16 for 2-byte, 32 for 1-byte."""
    s = 8
    for dt in dtypes:
        s = max(s, 32 // max(1, jnp.dtype(dt).itemsize))
    return s


def _device_kind():
    try:
        return jax.devices()[0].device_kind.lower()
    except Exception:  # pragma: no cover - defensive
        return ""


def _generation_plan():
    """Per-generation tiling knobs -> (target block bytes, vmem_limit_bytes, deep_pipeline)."""
    kind = _device_kind()
    if "v7" in kind:
        # 64 MiB physical VMEM / TC, 32 MiB scoped default -> raise explicitly.
        # 2 in + 2 out buffers at 8 MiB = 32 MiB, well under the 48 MiB budget.
        return 8 * 1024 * 1024, 48 * 1024 * 1024, True
    if "v6" in kind:
        # 128 MiB VMEM, 32 MiB scoped default: 4 x 6 MiB buffers fit comfortably.
        return 6 * 1024 * 1024, None, False
    if "v5" in kind:
        # 16 MiB scoped default: keep 4 buffers ~<= 10 MiB, leave headroom.
        return int(2.5 * 1024 * 1024), None, False
    # Unknown generation: conservative.
    return 2 * 1024 * 1024, None, False


def _choose_cols(n, sub, min_grid):
    """Pick the lane-dense slab width (multiple of 128)."""
    # 1st pass: exact divisor, sublane-aligned row count, healthy grid length.
    for c in _COL_CANDIDATES:
        rows = n // c
        if rows and n % c == 0 and rows % sub == 0 and rows >= min_grid * sub:
            return c
    # 2nd pass: largest exact divisor (short grids are fine for small tensors).
    for c in _COL_CANDIDATES:
        if n % c == 0 and n // c:
            return c
    # 3rd pass (n % 128 != 0 -> prefix + tail path): widest cols with enough rows.
    for c in _COL_CANDIDATES:
        if n // c >= min_grid * sub:
            return c
    return _LANE


def _choose_tr(rows, cols, itemsize, sub, target_bytes, min_grid):
    """Pick the row-tile (second-to-last block dim)."""
    if rows <= sub:
        return rows                       # full-extent dim: no alignment needed
    # Largest sublane-aligned tile within the per-buffer byte budget.
    tr = max(sub, (target_bytes // (cols * itemsize)) // sub * sub)
    # Keep >= min_grid steps when rows allow it, so the DMA pipeline reaches
    # steady state and v7x can split the row axis evenly over its 2 TCs.
    if rows >= min_grid * sub:
        tr = min(tr, max(sub, (rows // min_grid) // sub * sub))
    tr = min(tr, rows)
    # Prefer a tr that divides rows exactly (avoids a masked ragged last block).
    if rows % tr:
        t = tr
        for _ in range(64):               # bounded search
            t -= sub
            if t < sub:
                break
            if rows % t == 0:
                return t
    return tr


def _lambda_kernel_factory(func):
    """Pallas kernel body: apply `func` elementwise to the current VMEM tile."""

    def kernel(x_ref, o_ref):
        o_ref[...] = func(x_ref[...]).astype(o_ref.dtype)

    return kernel


class Lambda:
    """JAX/Pallas analogue of the PyTorch Lambda module.

    `func` must be jnp-traceable.  Shape-preserving funcs are assumed
    elementwise by default (they run on flattened lane-dense tiles inside a
    Pallas kernel).  Pass ``elementwise=False`` for shape-preserving but
    position-dependent funcs (softmax, cumsum, flip, per-row norms, ...), or
    ``elementwise=True`` to force the Pallas path.  Shape-changing funcs
    (reshape/view/permute glue) and tiny tensors run as plain (jitted) JAX.
    """

    def __init__(self, func, elementwise=None):
        self.func = func
        self.elementwise = elementwise
        self._kernel = _lambda_kernel_factory(func)
        self._cache = {}  # (shape, dtype) -> jitted runner

    # ------------------------------------------------------------------ #
    def __call__(self, x):
        x = jnp.asarray(x)
        key = (tuple(x.shape), jnp.dtype(x.dtype))
        fn = self._cache.get(key)
        if fn is None:
            fn = self._build(key)
            self._cache[key] = fn
        return fn(x)

    # ------------------------------------------------------------------ #
    def _build(self, key):
        shape, dtype = key
        out_aval = jax.eval_shape(self.func, jax.ShapeDtypeStruct(shape, dtype))
        n = math.prod(shape) if shape else 1

        elementwise = self.elementwise
        if elementwise is None:
            # Heuristic: shape-preserving funcs are assumed elementwise.
            # Position-dependent shape-preserving funcs must opt out.
            elementwise = out_aval.shape == tuple(shape)

        if (not elementwise) or out_aval.shape != tuple(shape) or n < _MIN_PALLAS_ELEMS:
            # TODO(synk): pure-reshape lambdas (e.g. x.view(bs, -1)) have no
            # compute hot path; they remain plain-JAX glue, not a Pallas kernel.
            return jax.jit(self.func)

        out_dtype = out_aval.dtype
        sub = _sublane(dtype, out_dtype)
        itemsize = max(jnp.dtype(dtype).itemsize, jnp.dtype(out_dtype).itemsize)
        target_bytes, vmem_limit, deep_pipeline = _generation_plan()

        cols = _choose_cols(n, sub, _MIN_GRID_STEPS)
        rows = n // cols
        n_main = rows * cols
        if rows == 0 or n_main < _MIN_PALLAS_ELEMS:
            return jax.jit(self.func)
        tail = n - n_main

        tr = _choose_tr(rows, cols, itemsize, sub, target_bytes, _MIN_GRID_STEPS)
        grid = (pl.cdiv(rows, tr),)

        spec_kwargs = {}
        if deep_pipeline and grid[0] >= 3:
            # v7x only: a third buffer covers DMA-issue jitter / prologue.
            spec_kwargs["pipeline_mode"] = pl.Buffered(3)

        pallas_fn = pl.pallas_call(
            self._kernel,
            out_shape=jax.ShapeDtypeStruct((rows, cols), out_dtype),
            grid=grid,
            in_specs=[pl.BlockSpec((tr, cols), lambda i: (i, 0), **spec_kwargs)],
            out_specs=pl.BlockSpec((tr, cols), lambda i: (i, 0), **spec_kwargs),
            compiler_params=pltpu.CompilerParams(
                # TODO(synk): verify with xprof that "parallel" shards the row
                # axis over both v7x TensorCores; switch to CORE_PARALLEL if not.
                dimension_semantics=("parallel",),
                vmem_limit_bytes=vmem_limit,
            ),
        )

        func = self.func
        shape_t = tuple(shape)

        if tail == 0:
            # Common case: free contiguous reshape in, free reshape out.
            def runner(x):
                return pallas_fn(x.reshape(rows, cols)).reshape(shape_t)
        else:
            # Ragged case: Pallas on the 128-aligned prefix, plain JAX on the
            # (< cols)-element tail.  Avoids full-size pad + slice copies.
            # TODO(synk): funcs closing over auxiliary arrays (e.g. t * w) are
            # not supported on the Pallas path; they would be traced into the
            # kernel with a mismatched flattened tile shape.
            def runner(x):
                flat = x.reshape(-1)
                out_main = pallas_fn(flat[:n_main].reshape(rows, cols)).reshape(-1)
                out_tail = func(flat[n_main:]).astype(out_main.dtype)
                return jnp.concatenate([out_main, out_tail]).reshape(shape_t)

        return jax.jit(runner)


if __name__ == "__main__":
    key = jax.random.PRNGKey(0)
    x = jax.random.normal(key, (2, 4, 16, 16), dtype=jnp.float32)

    # Representative elementwise func (the tutorial passes arbitrary callables).
    func = lambda t: jax.nn.relu(t) * 2.0 + 1.0
    layer = Lambda(func)

    out = jax.block_until_ready(layer(x))
    ref = func(x)
    assert out.shape == x.shape and out.dtype == ref.dtype
    assert jnp.allclose(out, ref, atol=1e-6), "small-tensor mismatch"

    # Larger tensor exercises the multi-block tiled / pipelined path (grid > 1).
    x_big = jax.random.normal(jax.random.PRNGKey(1), (8, 16, 128, 128), jnp.float32)
    out_big = jax.block_until_ready(layer(x_big))
    assert jnp.allclose(out_big, func(x_big), atol=1e-6), "big-tensor mismatch"

    # Ragged size (numel % 128 != 0) exercises the prefix + plain-JAX-tail path.
    x_rag = jax.random.normal(jax.random.PRNGKey(2), (10, 150), jnp.float32)
    out_rag = jax.block_until_ready(layer(x_rag))
    assert jnp.allclose(out_rag, func(x_rag), atol=1e-6), "ragged-tensor mismatch"

    # dtype-changing lambda: output keeps func's native dtype (like PyTorch Lambda).
    cast_layer = Lambda(lambda t: (t * 0.5).astype(jnp.bfloat16))
    out_c = jax.block_until_ready(cast_layer(x))
    assert out_c.dtype == jnp.bfloat16
    assert jnp.allclose(out_c.astype(jnp.float32), x * 0.5, atol=2e-2, rtol=2e-2)

    # Pure-shape lambda (view/flatten) stays plain-JAX glue, like the tutorial usage.
    flat_layer = Lambda(lambda t: t.reshape(t.shape[0], -1))
    out_f = jax.block_until_ready(flat_layer(x))
    assert out_f.shape == (2, 4 * 16 * 16)
    assert jnp.array_equal(out_f, x.reshape(2, -1))

    print("KERNEL_OK")
</pallas_src>

<mosaic_0001>
module attributes {stable_mosaic.version = 11 : i64} {
  func.func @kernel(%arg0: i32, %arg1: memref<1x2048xf32, #tpu.memory_space<vmem>>, %arg2: memref<1x2048xf32, #tpu.memory_space<vmem>>) attributes {dimension_semantics = [#tpu.dimension_semantics<parallel>], iteration_bounds = array<i64: 1>, scalar_prefetch = 0 : i64, scratch_operands = 0 : i64, tpu.core_type = #tpu.core_type<tc>, window_params = [{transform_indices = @transform_0, window_bounds = array<i64: 1, 2048>}, {transform_indices = @transform_1, window_bounds = array<i64: 1, 2048>}]} {
    %c0 = arith.constant 0 : index
    %c0_0 = arith.constant 0 : index
    %0 = vector.load %arg1[%c0, %c0_0] : memref<1x2048xf32, #tpu.memory_space<vmem>>, vector<1x2048xf32>
    %cst = arith.constant 0.000000e+00 : f32
    %1 = vector.broadcast %cst : f32 to vector<1x2048xf32>
    %2 = arith.maximumf %0, %1 : vector<1x2048xf32>
    %cst_1 = arith.constant 2.000000e+00 : f32
    %3 = vector.broadcast %cst_1 : f32 to vector<1x2048xf32>
    %4 = arith.mulf %2, %3 : vector<1x2048xf32>
    %cst_2 = arith.constant 1.000000e+00 : f32
    %5 = vector.broadcast %cst_2 : f32 to vector<1x2048xf32>
    %6 = arith.addf %4, %5 : vector<1x2048xf32>
    %c0_3 = arith.constant 0 : index
    %c0_4 = arith.constant 0 : index
    %7 = vector.load %arg2[%c0_3, %c0_4] : memref<1x2048xf32, #tpu.memory_space<vmem>>, vector<1x2048xf32>
    tpu.vector_store %arg2[%c0_3, %c0_4], %6 {strides = array<i32>} : memref<1x2048xf32, #tpu.memory_space<vmem>>, vector<1x2048xf32>,
    return
  }
  func.func @transform_0(%arg0: i32) -> (i32, i32) {
    %c0_i32 = arith.constant 0 : i32
    %c0_i32_0 = arith.constant 0 : i32
    return %arg0, %c0_i32 : i32, i32
  }
  func.func @transform_1(%arg0: i32) -> (i32, i32) {
    %c0_i32 = arith.constant 0 : i32
    %c0_i32_0 = arith.constant 0 : i32
    return %arg0, %c0_i32 : i32, i32
  }
}

</mosaic_0001>

<llo_original>
// kernel: runner.1
$region0: #{runner.1}
  #allocation0 [shape = 'u32[]', space=smem, size = 0x4, offset = 0x4, fixed_abs, tag = 'smem constant byte address 0x4 - core index']
  #allocation1 [shape = 'u32[144,128]{1,0:T(1,128)}', space=vmem, size = 0x12000, scoped, tag = 'internal scratch']
  %s0 = inlined_call_operand.vmem [shape: f32[1,2048], index: 0, kind: input, shape index: {}]
  %s1 = inlined_call_operand.vmem [shape: f32[1,2048], index: 1, kind: output, shape index: {}]
  %s2 = sld [smem:[#allocation0]]
  $region14: #{runner.1} parent=0
    _
  %s4 = ssub.s32 1, %s2
  %s5 = scalar_select 0, %s4, %s2
  // Predicated region
  $region2: #{runner.1} parent=0 // pred_check
    _
  $region3: #{runner.1} parent=0 // pred_check_branch
    %7 = sbr.rel (0) target = $region5
  $region4: #{runner.1} parent=0 // pred_region
    _
  $region5: #{runner.1} parent=0 // pred_fallthru
    _
  %v8 = vld [vmem:[%s0] sm:$0xff]
  %v9 = vld [vmem:[%s0 + $0x8] sm:$0xff]
  %v10 = vmax.f32 %v8, 0.0
  %v11 = vmax.f32 %v9, 0.0
  %v12 = vmul.f32 %v10, 2.0
  %v13 = vmul.f32 %v11, 2.0
  %v14 = vadd.f32 %v12, 1.0
  %v15 = vadd.f32 %v13, 1.0
  %16 = vst [vmem:[%s1] sm:$0xff] %v14
  %17 = vst [vmem:[%s1 + $0x8] sm:$0xff] %v15
  // Predicated region
  $region6: #{runner.1} parent=0 // pred_check
    _
  $region7: #{runner.1} parent=0 // pred_check_branch
    %19 = sbr.rel (0) target = $region9
  $region8: #{runner.1} parent=0 // pred_region
    _
  $region9: #{runner.1} parent=0 // pred_fallthru
    _
  // Predicated region
  $region10: #{runner.1} parent=0 // pred_check
    _
  $region11: #{runner.1} parent=0 // pred_check_branch
    %21 = sbr.rel (0) target = $region13
  $region12: #{runner.1} parent=0 // pred_region
    _
  $region13: #{runner.1} parent=0 // pred_fallthru
    _

</llo_original>
